<compile_context>
chip_gen: v7x
topology: tpu7x:2x2x1
jax: 0.10.0
libtpu: 0.0.40
codegen_flags: <defaults>
</compile_context>

<pallas_src>
import jax
import jax.numpy as jnp
from jax.experimental import pallas as pl
from jax.experimental.pallas import tpu as pltpu


def _round_up(x, m):
    return ((x + m - 1) // m) * m


def _union_rgcn_kernel(dst_ref, composed_ref, h_ref, prev_h_ref, norm_ref,
                       wn_ref, wloop_ref, wskip_ref, bskip_ref,
                       out_ref, acc_ref):
    e_idx = pl.program_id(1)

    @pl.when(e_idx == 0)
    def _init():
        acc_ref[...] = jnp.zeros_like(acc_ref)

    tn = acc_ref.shape[0]
    te = dst_ref.shape[1]
    cdt = composed_ref.dtype

    # scatter[i, j] = 1 iff dst[j] == (node-tile offset + i); built in-kernel
    # from the int32 dst lane-vector -> no dense [N, E] matrix in HBM/VMEM.
    node_ids = (pl.program_id(0) * tn
                + jax.lax.broadcasted_iota(jnp.int32, (tn, te), 0))
    scatter = (dst_ref[...] == node_ids).astype(cdt)            # [tn, te]

    # Pre-projection aggregation: acc += scatter @ composed  (MXU, f32 acc).
    acc_ref[...] += jnp.dot(scatter, composed_ref[...],
                            preferred_element_type=jnp.float32)

    @pl.when(e_idx == pl.num_programs(1) - 1)
    def _finalize():
        # Project aggregated neighbour messages, then apply the node norm.
        agg = jnp.dot(acc_ref[...].astype(cdt), wn_ref[...],
                      preferred_element_type=jnp.float32)
        h_prop = agg * norm_ref[...]
        # Self-loop message.
        loop_msg = jnp.dot(h_ref[...], wloop_ref[...],
                           preferred_element_type=jnp.float32)
        # Skip-connection gate (sigmoid -> EUP); element-wise math in f32.
        gate = jnp.dot(prev_h_ref[...], wskip_ref[...],
                       preferred_element_type=jnp.float32) + bskip_ref[...]
        skip_w = jax.nn.sigmoid(gate)
        prev_f32 = prev_h_ref[...].astype(jnp.float32)
        node_repr = skip_w * (h_prop + loop_msg) + (1.0 - skip_w) * prev_f32
        out_ref[...] = jnp.maximum(node_repr, 0.0).astype(out_ref.dtype)
        # TODO(synk): dropout is None when dropout==0.0 (as in the PyTorch
        # default used here), so it is intentionally not applied.


def union_rgcn_forward(h, prev_h, emb_rel, src, dst, etype, norm, params,
                       comp="sub", compute_dtype=jnp.bfloat16,
                       tile_n=256, tile_e=512):
    """h, prev_h: [N, F]; emb_rel: [R, F]; src/dst/etype: [E] int; norm: [N, 1]."""
    N, F = h.shape
    E = int(src.shape[0])

    # ---- glue: data-dependent gather + composition (kept in JAX) -----------
    rel = emb_rel[etype]                       # [E, F]
    h_src = h[src]                             # [E, F]
    if comp == "sub":                          # PyTorch: msg = node + relation
        composed = h_src + rel
    elif comp == "mult":
        composed = h_src * rel
    else:
        raise ValueError(comp)

    # ---- padding / tiling ---------------------------------------------------
    FP = _round_up(F, 128)                                 # lane-dense features
    TN = min(_round_up(tile_n, 8), _round_up(N, 8))        # node tile
    NP = _round_up(N, TN)
    TE = min(_round_up(tile_e, 128), _round_up(E, 128))    # edge tile
    EP = _round_up(E, TE)

    def pad2(x, rows, cols, dtype):
        x = jnp.asarray(x, jnp.float32)
        return jnp.pad(x, ((0, rows - x.shape[0]),
                           (0, cols - x.shape[1]))).astype(dtype)

    cdt = compute_dtype
    composed_p = pad2(composed, EP, FP, cdt)
    h_p = pad2(h, NP, FP, cdt)
    prev_p = pad2(prev_h, NP, FP, cdt)
    norm_p = pad2(norm, NP, 1, jnp.float32)
    wn_p = pad2(params["weight_neighbor"], FP, FP, cdt)
    wl_p = pad2(params["loop_weight"], FP, FP, cdt)
    ws_p = pad2(params["skip_connect_weight"], FP, FP, cdt)
    bs_p = pad2(params["skip_connect_bias"].reshape(1, F), 1, FP, jnp.float32)
    # Padded edges get dst = NP (matches no node id) -> silently dropped.
    dst_p = jnp.full((1, EP), NP, jnp.int32).at[0, :E].set(dst.astype(jnp.int32))

    grid = (NP // TN, EP // TE)

    # Advisory cost estimate for the XLA scheduler around the custom call.
    flops = 2 * NP * EP * FP + 3 * 2 * NP * FP * FP
    bytes_accessed = sum(int(x.size) * x.dtype.itemsize
                         for x in (dst_p, composed_p, h_p, prev_p, norm_p,
                                   wn_p, wl_p, ws_p, bs_p))
    bytes_accessed += NP * FP * 4                           # output
    cost = pl.CostEstimate(flops=flops, transcendentals=NP * FP,
                           bytes_accessed=bytes_accessed)

    out_pad = pl.pallas_call(
        _union_rgcn_kernel,
        out_shape=jax.ShapeDtypeStruct((NP, FP), jnp.float32),
        grid_spec=pltpu.PrefetchScalarGridSpec(
            num_scalar_prefetch=0,
            grid=grid,
            in_specs=[
                pl.BlockSpec((1, TE), lambda n, e: (0, e)),    # dst indices
                pl.BlockSpec((TE, FP), lambda n, e: (e, 0)),   # composed msgs
                pl.BlockSpec((TN, FP), lambda n, e: (n, 0)),   # h
                pl.BlockSpec((TN, FP), lambda n, e: (n, 0)),   # prev_h
                pl.BlockSpec((TN, 1), lambda n, e: (n, 0)),    # norm
                pl.BlockSpec((FP, FP), lambda n, e: (0, 0)),   # weight_neighbor
                pl.BlockSpec((FP, FP), lambda n, e: (0, 0)),   # loop_weight
                pl.BlockSpec((FP, FP), lambda n, e: (0, 0)),   # skip_connect_w
                pl.BlockSpec((1, FP), lambda n, e: (0, 0)),    # skip_connect_b
            ],
            out_specs=pl.BlockSpec((TN, FP), lambda n, e: (n, 0)),
            scratch_shapes=[pltpu.VMEM((TN, FP), jnp.float32)],
        ),
        compiler_params=pltpu.CompilerParams(
            dimension_semantics=("parallel", "arbitrary"),
            # Explicit scoped-VMEM budget; the tiles above use < 2 MiB, so
            # this is safe on v5e/v6e (128 MiB) and v7x (64 MiB physical).
            vmem_limit_bytes=32 * 1024 * 1024,
        ),
        cost_estimate=cost,
    )(dst_p, composed_p, h_p, prev_p, norm_p, wn_p, wl_p, ws_p, bs_p)

    return out_pad[:N, :F].astype(h.dtype)


def _xavier_uniform(key, shape, gain):
    fan_in, fan_out = shape[0], shape[1]
    bound = gain * jnp.sqrt(6.0 / (fan_in + fan_out))
    return jax.random.uniform(key, shape, jnp.float32, -bound, bound)


def _reference(h, prev_h, emb_rel, src, dst, etype, norm, params, comp="sub"):
    N, _ = h.shape
    rel = emb_rel[etype]
    h_src = h[src]
    composed = h_src + rel if comp == "sub" else h_src * rel
    msg = composed @ params["weight_neighbor"]
    agg = jax.ops.segment_sum(msg, dst, num_segments=N)
    h_prop = agg * norm
    loop_msg = h @ params["loop_weight"]
    skip_w = jax.nn.sigmoid(prev_h @ params["skip_connect_weight"]
                            + params["skip_connect_bias"][None, :])
    node_repr = skip_w * (h_prop + loop_msg) + (1.0 - skip_w) * prev_h
    return jnp.maximum(node_repr, 0.0)


if __name__ == "__main__":
    # Small deterministic problem: in_feat == out_feat == 32 (msg_func views
    # source features as out_feat, so they must match).
    N, E, F, R = 64, 128, 32, 8
    gain = jnp.sqrt(2.0)  # nn.init.calculate_gain('relu')

    key = jax.random.PRNGKey(0)
    keys = jax.random.split(key, 10)

    params = {
        "weight_neighbor": _xavier_uniform(keys[0], (F, F), gain),
        "loop_weight": _xavier_uniform(keys[1], (F, F), gain),
        # evolve_loop_weight is created in __init__ but unused by forward().
        "evolve_loop_weight": _xavier_uniform(keys[2], (F, F), gain),
        "skip_connect_weight": _xavier_uniform(keys[3], (F, F), gain),
        "skip_connect_bias": jnp.zeros((F,), jnp.float32),
    }

    h = jax.random.normal(keys[4], (N, F), jnp.float32)          # g.ndata['h']
    prev_h = jax.random.normal(keys[5], (N, F), jnp.float32)     # prev layer h
    emb_rel = jax.random.normal(keys[6], (R, F), jnp.float32)    # relation emb
    src = jax.random.randint(keys[7], (E,), 0, N, jnp.int32)
    dst = jax.random.randint(keys[8], (E,), 0, N, jnp.int32)
    etype = jax.random.randint(keys[9], (E,), 0, R, jnp.int32)
    # typical DGL norm: 1 / in-degree (clamped)
    indeg = jax.ops.segment_sum(jnp.ones((E,), jnp.float32), dst,
                                num_segments=N)
    norm = (1.0 / jnp.maximum(indeg, 1.0)).reshape(N, 1)

    ref = _reference(h, prev_h, emb_rel, src, dst, etype, norm, params,
                     comp="sub")

    # f32 compute path: tight check against module semantics.
    out_f32 = union_rgcn_forward(h, prev_h, emb_rel, src, dst, etype, norm,
                                 params, comp="sub",
                                 compute_dtype=jnp.float32)
    out_f32 = jax.block_until_ready(out_f32)
    assert out_f32.shape == (N, F)
    assert jnp.allclose(out_f32, ref, atol=5e-4, rtol=5e-4), "f32 mismatch"

    # bf16 MXU-operand path (default): looser tolerance for bf16 rounding.
    out_bf16 = union_rgcn_forward(h, prev_h, emb_rel, src, dst, etype, norm,
                                  params, comp="sub",
                                  compute_dtype=jnp.bfloat16)
    out_bf16 = jax.block_until_ready(out_bf16)
    assert out_bf16.shape == (N, F)
    assert float(jnp.max(jnp.abs(out_bf16 - ref))) < 0.25, "bf16 mismatch"

    print("KERNEL_OK")
</pallas_src>

<mosaic_0001>
module attributes {stable_mosaic.version = 11 : i64} {
  func.func @_union_rgcn_kernel(%arg0: i32, %arg1: i32, %arg2: memref<1x128xi32, #tpu.memory_space<vmem>>, %arg3: memref<128x128xf32, #tpu.memory_space<vmem>>, %arg4: memref<64x128xf32, #tpu.memory_space<vmem>>, %arg5: memref<64x128xf32, #tpu.memory_space<vmem>>, %arg6: memref<64x1xf32, #tpu.memory_space<vmem>>, %arg7: memref<128x128xf32, #tpu.memory_space<vmem>>, %arg8: memref<128x128xf32, #tpu.memory_space<vmem>>, %arg9: memref<128x128xf32, #tpu.memory_space<vmem>>, %arg10: memref<1x128xf32, #tpu.memory_space<vmem>>, %arg11: memref<64x128xf32, #tpu.memory_space<vmem>>, %arg12: memref<64x128xf32, #tpu.memory_space<vmem>>) attributes {dimension_semantics = [#tpu.dimension_semantics<parallel>, #tpu.dimension_semantics<arbitrary>], iteration_bounds = array<i64: 1, 1>, scalar_prefetch = 0 : i64, scratch_operands = 1 : i64, tpu.core_type = #tpu.core_type<tc>, window_params = [{transform_indices = @transform_0, window_bounds = array<i64: 1, 128>}, {transform_indices = @transform_1, window_bounds = array<i64: 128, 128>}, {transform_indices = @transform_2, window_bounds = array<i64: 64, 128>}, {transform_indices = @transform_3, window_bounds = array<i64: 64, 128>}, {transform_indices = @transform_4, window_bounds = array<i64: 64, 1>}, {pipeline_mode = #tpu.pipeline_mode<synchronous>, transform_indices = @transform_5, window_bounds = array<i64: 128, 128>}, {pipeline_mode = #tpu.pipeline_mode<synchronous>, transform_indices = @transform_6, window_bounds = array<i64: 128, 128>}, {pipeline_mode = #tpu.pipeline_mode<synchronous>, transform_indices = @transform_7, window_bounds = array<i64: 128, 128>}, {pipeline_mode = #tpu.pipeline_mode<synchronous>, transform_indices = @transform_8, window_bounds = array<i64: 1, 128>}, {transform_indices = @transform_9, window_bounds = array<i64: 64, 128>}]} {
    %c0_i32 = arith.constant 0 : i32
    %0 = arith.cmpi eq, %arg1, %c0_i32 : i32
    %1 = arith.extui %0 : i1 to i32
    %c0_i32_0 = arith.constant 0 : i32
    %2 = arith.cmpi ne, %1, %c0_i32_0 : i32
    scf.if %2 {
      %cst_10 = arith.constant 0.000000e+00 : f32
      %20 = vector.broadcast %cst_10 : f32 to vector<64x128xf32>
      %c0_11 = arith.constant 0 : index
      %c0_12 = arith.constant 0 : index
      %21 = vector.load %arg12[%c0_11, %c0_12] : memref<64x128xf32, #tpu.memory_space<vmem>>, vector<64x128xf32>
      tpu.vector_store %arg12[%c0_11, %c0_12], %20 {strides = array<i32>} : memref<64x128xf32, #tpu.memory_space<vmem>>, vector<64x128xf32>,
    } else {
    }
    %c64_i32 = arith.constant 64 : i32
    %3 = arith.muli %arg0, %c64_i32 : i32
    %4 = tpu.iota {dimensions = array<i32: 0>} : vector<64x128xi32>
    %5 = vector.broadcast %3 : i32 to vector<64x128xi32>
    %6 = arith.addi %5, %4 : vector<64x128xi32>
    %c0 = arith.constant 0 : index
    %c0_1 = arith.constant 0 : index
    %7 = vector.load %arg2[%c0, %c0_1] : memref<1x128xi32, #tpu.memory_space<vmem>>, vector<1x128xi32>
    %8 = vector.broadcast %7 : vector<1x128xi32> to vector<64x128xi32>
    %9 = arith.cmpi eq, %8, %6 : vector<64x128xi32>
    %10 = arith.extui %9 : vector<64x128xi1> to vector<64x128xi32>
    %11 = arith.sitofp %10 : vector<64x128xi32> to vector<64x128xf32>
    %c0_2 = arith.constant 0 : index
    %c0_3 = arith.constant 0 : index
    %12 = vector.load %arg12[%c0_2, %c0_3] : memref<64x128xf32, #tpu.memory_space<vmem>>, vector<64x128xf32>
    %c0_4 = arith.constant 0 : index
    %c0_5 = arith.constant 0 : index
    %13 = vector.load %arg3[%c0_4, %c0_5] : memref<128x128xf32, #tpu.memory_space<vmem>>, vector<128x128xf32>
    %cst = arith.constant dense<0.000000e+00> : vector<64x128xf32>
    %14 = tpu.matmul %11, %13, %cst {dimension_numbers = #tpu.dot_dimension_numbers<[1], [0], [0], [1], [0, 0, 1, 1], [], []>} : vector<64x128xf32>, vector<128x128xf32>, vector<64x128xf32> -> vector<64x128xf32>
    %15 = arith.addf %12, %14 : vector<64x128xf32>
    %c0_6 = arith.constant 0 : index
    %c0_7 = arith.constant 0 : index
    %16 = vector.load %arg12[%c0_6, %c0_7] : memref<64x128xf32, #tpu.memory_space<vmem>>, vector<64x128xf32>
    tpu.vector_store %arg12[%c0_6, %c0_7], %15 {strides = array<i32>} : memref<64x128xf32, #tpu.memory_space<vmem>>, vector<64x128xf32>,
    %c0_i32_8 = arith.constant 0 : i32
    %17 = arith.cmpi eq, %arg1, %c0_i32_8 : i32
    %18 = arith.extui %17 : i1 to i32
    %c0_i32_9 = arith.constant 0 : i32
    %19 = arith.cmpi ne, %18, %c0_i32_9 : i32
    scf.if %19 {
      %c0_10 = arith.constant 0 : index
      %c0_11 = arith.constant 0 : index
      %20 = vector.load %arg12[%c0_10, %c0_11] : memref<64x128xf32, #tpu.memory_space<vmem>>, vector<64x128xf32>
      %c0_12 = arith.constant 0 : index
      %c0_13 = arith.constant 0 : index
      %21 = vector.load %arg7[%c0_12, %c0_13] : memref<128x128xf32, #tpu.memory_space<vmem>>, vector<128x128xf32>
      %cst_14 = arith.constant dense<0.000000e+00> : vector<64x128xf32>
      %22 = tpu.matmul %20, %21, %cst_14 {dimension_numbers = #tpu.dot_dimension_numbers<[1], [0], [0], [1], [0, 0, 1, 1], [], []>} : vector<64x128xf32>, vector<128x128xf32>, vector<64x128xf32> -> vector<64x128xf32>
      %c0_15 = arith.constant 0 : index
      %c0_16 = arith.constant 0 : index
      %23 = vector.load %arg6[%c0_15, %c0_16] : memref<64x1xf32, #tpu.memory_space<vmem>>, vector<64x1xf32>
      %24 = vector.broadcast %23 : vector<64x1xf32> to vector<64x128xf32>
      %25 = arith.mulf %22, %24 : vector<64x128xf32>
      %c0_17 = arith.constant 0 : index
      %c0_18 = arith.constant 0 : index
      %26 = vector.load %arg4[%c0_17, %c0_18] : memref<64x128xf32, #tpu.memory_space<vmem>>, vector<64x128xf32>
      %c0_19 = arith.constant 0 : index
      %c0_20 = arith.constant 0 : index
      %27 = vector.load %arg8[%c0_19, %c0_20] : memref<128x128xf32, #tpu.memory_space<vmem>>, vector<128x128xf32>
      %cst_21 = arith.constant dense<0.000000e+00> : vector<64x128xf32>
      %28 = tpu.matmul %26, %27, %cst_21 {dimension_numbers = #tpu.dot_dimension_numbers<[1], [0], [0], [1], [0, 0, 1, 1], [], []>} : vector<64x128xf32>, vector<128x128xf32>, vector<64x128xf32> -> vector<64x128xf32>
      %c0_22 = arith.constant 0 : index
      %c0_23 = arith.constant 0 : index
      %29 = vector.load %arg5[%c0_22, %c0_23] : memref<64x128xf32, #tpu.memory_space<vmem>>, vector<64x128xf32>
      %c0_24 = arith.constant 0 : index
      %c0_25 = arith.constant 0 : index
      %30 = vector.load %arg9[%c0_24, %c0_25] : memref<128x128xf32, #tpu.memory_space<vmem>>, vector<128x128xf32>
      %cst_26 = arith.constant dense<0.000000e+00> : vector<64x128xf32>
      %31 = tpu.matmul %29, %30, %cst_26 {dimension_numbers = #tpu.dot_dimension_numbers<[1], [0], [0], [1], [0, 0, 1, 1], [], []>} : vector<64x128xf32>, vector<128x128xf32>, vector<64x128xf32> -> vector<64x128xf32>
      %c0_27 = arith.constant 0 : index
      %c0_28 = arith.constant 0 : index
      %32 = vector.load %arg10[%c0_27, %c0_28] : memref<1x128xf32, #tpu.memory_space<vmem>>, vector<1x128xf32>
      %33 = vector.broadcast %32 : vector<1x128xf32> to vector<64x128xf32>
      %34 = arith.addf %31, %33 : vector<64x128xf32>
      %35 = arith.negf %34 : vector<64x128xf32>
      %36 = math.exp %35 : vector<64x128xf32>
      %cst_29 = arith.constant 1.000000e+00 : f32
      %37 = vector.broadcast %cst_29 : f32 to vector<64x128xf32>
      %38 = arith.addf %37, %36 : vector<64x128xf32>
      %39 = arith.divf %37, %38 : vector<64x128xf32>
      %c0_30 = arith.constant 0 : index
      %c0_31 = arith.constant 0 : index
      %40 = vector.load %arg5[%c0_30, %c0_31] : memref<64x128xf32, #tpu.memory_space<vmem>>, vector<64x128xf32>
      %41 = arith.addf %25, %28 : vector<64x128xf32>
      %42 = arith.mulf %39, %41 : vector<64x128xf32>
      %cst_32 = arith.constant 1.000000e+00 : f32
      %43 = vector.broadcast %cst_32 : f32 to vector<64x128xf32>
      %44 = arith.subf %43, %39 : vector<64x128xf32>
      %45 = arith.mulf %44, %40 : vector<64x128xf32>
      %46 = arith.addf %42, %45 : vector<64x128xf32>
      %cst_33 = arith.constant 0.000000e+00 : f32
      %47 = vector.broadcast %cst_33 : f32 to vector<64x128xf32>
      %48 = arith.maximumf %46, %47 : vector<64x128xf32>
      %c0_34 = arith.constant 0 : index
      %c0_35 = arith.constant 0 : index
      %49 = vector.load %arg11[%c0_34, %c0_35] : memref<64x128xf32, #tpu.memory_space<vmem>>, vector<64x128xf32>
      tpu.vector_store %arg11[%c0_34, %c0_35], %48 {strides = array<i32>} : memref<64x128xf32, #tpu.memory_space<vmem>>, vector<64x128xf32>,
    } else {
    }
    return
  }
  func.func @transform_0(%arg0: i32, %arg1: i32) -> (i32, i32) {
    %c0_i32 = arith.constant 0 : i32
    %c0_i32_0 = arith.constant 0 : i32
    return %c0_i32, %arg1 : i32, i32
  }
  func.func @transform_1(%arg0: i32, %arg1: i32) -> (i32, i32) {
    %c0_i32 = arith.constant 0 : i32
    %c0_i32_0 = arith.constant 0 : i32
    return %arg1, %c0_i32 : i32, i32
  }
  func.func @transform_2(%arg0: i32, %arg1: i32) -> (i32, i32) {
    %c0_i32 = arith.constant 0 : i32
    %c0_i32_0 = arith.constant 0 : i32
    return %arg0, %c0_i32 : i32, i32
  }
  func.func @transform_3(%arg0: i32, %arg1: i32) -> (i32, i32) {
    %c0_i32 = arith.constant 0 : i32
    %c0_i32_0 = arith.constant 0 : i32
    return %arg0, %c0_i32 : i32, i32
  }
  func.func @transform_4(%arg0: i32, %arg1: i32) -> (i32, i32) {
    %c0_i32 = arith.constant 0 : i32
    %c0_i32_0 = arith.constant 0 : i32
    return %arg0, %c0_i32 : i32, i32
  }
  func.func @transform_5(%arg0: i32, %arg1: i32) -> (i32, i32) {
    %c0_i32 = arith.constant 0 : i32
    %c0_i32_0 = arith.constant 0 : i32
    %c0_i32_1 = arith.constant 0 : i32
    return %c0_i32, %c0_i32_0 : i32, i32
  }
  func.func @transform_6(%arg0: i32, %arg1: i32) -> (i32, i32) {
    %c0_i32 = arith.constant 0 : i32
    %c0_i32_0 = arith.constant 0 : i32
    %c0_i32_1 = arith.constant 0 : i32
    return %c0_i32, %c0_i32_0 : i32, i32
  }
  func.func @transform_7(%arg0: i32, %arg1: i32) -> (i32, i32) {
    %c0_i32 = arith.constant 0 : i32
    %c0_i32_0 = arith.constant 0 : i32
    %c0_i32_1 = arith.constant 0 : i32
    return %c0_i32, %c0_i32_0 : i32, i32
  }
  func.func @transform_8(%arg0: i32, %arg1: i32) -> (i32, i32) {
    %c0_i32 = arith.constant 0 : i32
    %c0_i32_0 = arith.constant 0 : i32
    %c0_i32_1 = arith.constant 0 : i32
    return %c0_i32, %c0_i32_0 : i32, i32
  }
  func.func @transform_9(%arg0: i32, %arg1: i32) -> (i32, i32) {
    %c0_i32 = arith.constant 0 : i32
    %c0_i32_0 = arith.constant 0 : i32
    return %arg0, %c0_i32 : i32, i32
  }
}

</mosaic_0001>

<llo_original>
// kernel: tpu_custom_call.1
$region0: #{tpu_custom_call.1}
  #allocation0 [shape = 'u32[]', space=smem, size = 0x4, offset = 0x4, fixed_abs, tag = 'smem constant byte address 0x4 - core index']
  #allocation1 [shape = 'u32[144,128]{1,0:T(1,128)}', space=vmem, size = 0x12000, scoped, tag = 'internal scratch']
  #allocation2 [shape = 'f32[64,128]{1,0:T(8,128)}', space=vmem, size = 0x8000, scoped, tag = 'scratch operand']
  %s0 = inlined_call_operand.vmem [shape: s32[1,128], index: 0, kind: input, shape index: {}]
  %s1 = inlined_call_operand.hbm [shape: f32[128,128], index: 1, kind: input, shape index: {}]
  %s2 = inlined_call_operand.vmem [shape: f32[64,128], index: 2, kind: input, shape index: {}]
  %s3 = inlined_call_operand.hbm [shape: f32[64,128], index: 3, kind: input, shape index: {}]
  %s4 = inlined_call_operand.vmem [shape: f32[64,1], index: 4, kind: input, shape index: {}]
  %s5 = inlined_call_operand.hbm [shape: f32[128,128], index: 5, kind: input, shape index: {}]
  %s6 = inlined_call_operand.hbm [shape: f32[128,128], index: 6, kind: input, shape index: {}]
  %s7 = inlined_call_operand.hbm [shape: f32[128,128], index: 7, kind: input, shape index: {}]
  %s8 = inlined_call_operand.vmem [shape: f32[1,128], index: 8, kind: input, shape index: {}]
  %s9 = inlined_call_operand.hbm [shape: f32[64,128], index: 9, kind: output, shape index: {}]
  %s10 = sld [smem:[#allocation0]]
  $region74: #{tpu_custom_call.1} parent=0
    _
  %s12 = ssub.s32 1, %s10
  %s13 = scalar_select 0, %s12, %s10
  $region1: #{tpu_custom_call.1} parent=0
    #allocation3 [shape = 'u8[65536]{0}', space=vmem, size = 0x10000, scoped, tag = 'input window, operand 1, single buffered']
    #allocation4 [shape = 's32[1]{0}', space=sflag, size = 0x4, scoped, tag = 'scoped memory for tpu_custom_call.1']
    #allocation5 [shape = 's32[1]{0}', space=sflag, size = 0x4, scoped, tag = 'scoped memory for tpu_custom_call.1']
    #allocation6 [shape = 'u8[32768]{0}', space=vmem, size = 0x8000, scoped, tag = 'input window, operand 3, single buffered']
    #allocation7 [shape = 's32[1]{0}', space=sflag, size = 0x4, scoped, tag = 'scoped memory for tpu_custom_call.1']
    #allocation8 [shape = 'u8[65536]{0}', space=vmem, size = 0x10000, scoped, tag = 'input window, operand 5, single buffered']
    #allocation9 [shape = 'u8[65536]{0}', space=vmem, size = 0x10000, scoped, tag = 'input window, operand 6, single buffered']
    #allocation10 [shape = 's32[1]{0}', space=sflag, size = 0x4, scoped, tag = 'scoped memory for tpu_custom_call.1']
    #allocation11 [shape = 'u8[65536]{0}', space=vmem, size = 0x10000, scoped, tag = 'input window, operand 7, single buffered']
    #allocation12 [shape = 'u8[32768]{0}', space=vmem, size = 0x8000, scoped, tag = 'output window, operand 0, single buffered']
    %14 = vsyncpa [#allocation4], 0
    %15 = vsyncpa [#allocation7], 0
    %16 = vsyncpa [#allocation10], 0
    %17 = vsyncpa [#allocation5], 0
    // Predicated region
    $region2: #{tpu_custom_call.1} parent=1 // pred_check
      _
    $region3: #{tpu_custom_call.1} parent=1 // pred_check_branch
      %19 = sbr.rel (0) target = $region5
    $region4: #{tpu_custom_call.1} parent=1 // pred_region
      _
    $region5: #{tpu_custom_call.1} parent=1 // pred_fallthru
      _
    // Predicated region
    $region6: #{tpu_custom_call.1} parent=1 // pred_check
      _
    $region7: #{tpu_custom_call.1} parent=1 // pred_check_branch
      %21 = sbr.rel (0) target = $region9
    $region8: #{tpu_custom_call.1} parent=1 // pred_region
      %s23 = ssub.s32 2048, 2048
      %24 = vsyncadd [#allocation4], %s23
      %s25 = sshll.u32 [#allocation3], 4
      %s26 = int_to_ptr.vmem [resolvable:$true] %s25
      %31 = dma.hbm_to_vmem [thread:$0]  %s1, 2048, %s26, [#allocation4], 128, 128, 8
    $region9: #{tpu_custom_call.1} parent=1 // pred_fallthru
      _
    // Predicated region
    $region10: #{tpu_custom_call.1} parent=1 // pred_check
      _
    $region11: #{tpu_custom_call.1} parent=1 // pred_check_branch
      %33 = sbr.rel (0) target = $region13
    $region12: #{tpu_custom_call.1} parent=1 // pred_region
      _
    $region13: #{tpu_custom_call.1} parent=1 // pred_fallthru
      _
    // Predicated region
    $region14: #{tpu_custom_call.1} parent=1 // pred_check
      _
    $region15: #{tpu_custom_call.1} parent=1 // pred_check_branch
      %35 = sbr.rel (0) target = $region17
    $region16: #{tpu_custom_call.1} parent=1 // pred_region
      %s37 = ssub.s32 1024, 1024
      %38 = vsyncadd [#allocation7], %s37
      %s39 = sshll.u32 [#allocation6], 4
      %s40 = int_to_ptr.vmem [resolvable:$true] %s39
      %45 = dma.hbm_to_vmem [thread:$0]  %s3, 1024, %s40, [#allocation7], 128, 128, 8
    $region17: #{tpu_custom_call.1} parent=1 // pred_fallthru
      _
    // Predicated region
    $region18: #{tpu_custom_call.1} parent=1 // pred_check
      _
    $region19: #{tpu_custom_call.1} parent=1 // pred_check_branch
      %47 = sbr.rel (0) target = $region21
    $region20: #{tpu_custom_call.1} parent=1 // pred_region
      _
    $region21: #{tpu_custom_call.1} parent=1 // pred_fallthru
      _
    // Predicated region
    $region22: #{tpu_custom_call.1} parent=1 // pred_check
      _
    $region23: #{tpu_custom_call.1} parent=1 // pred_check_branch
      %49 = sbr.rel (0) target = $region25
    $region24: #{tpu_custom_call.1} parent=1 // pred_region
      %s51 = ssub.s32 2048, 2048
      %52 = vsyncadd [#allocation7], %s51
      %s53 = sshll.u32 [#allocation8], 4
      %s54 = int_to_ptr.vmem [resolvable:$true] %s53
      %59 = dma.hbm_to_vmem [thread:$0]  %s5, 2048, %s54, [#allocation7], 128, 128, 8
    $region25: #{tpu_custom_call.1} parent=1 // pred_fallthru
      _
    // Predicated region
    $region26: #{tpu_custom_call.1} parent=1 // pred_check
      _
    $region27: #{tpu_custom_call.1} parent=1 // pred_check_branch
      %61 = sbr.rel (0) target = $region29
    $region28: #{tpu_custom_call.1} parent=1 // pred_region
      %s63 = ssub.s32 2048, 2048
      %64 = vsyncadd [#allocation10], %s63
      %s65 = sshll.u32 [#allocation9], 4
      %s66 = int_to_ptr.vmem [resolvable:$true] %s65
      %71 = dma.hbm_to_vmem [thread:$0]  %s6, 2048, %s66, [#allocation10], 128, 128, 8
    $region29: #{tpu_custom_call.1} parent=1 // pred_fallthru
      _
    // Predicated region
    $region30: #{tpu_custom_call.1} parent=1 // pred_check
      _
    $region31: #{tpu_custom_call.1} parent=1 // pred_check_branch
      %73 = sbr.rel (0) target = $region33
    $region32: #{tpu_custom_call.1} parent=1 // pred_region
      %s75 = ssub.s32 2048, 2048
      %76 = vsyncadd [#allocation10], %s75
      %s77 = sshll.u32 [#allocation11], 4
      %s78 = int_to_ptr.vmem [resolvable:$true] %s77
      %83 = dma.hbm_to_vmem [thread:$0]  %s7, 2048, %s78, [#allocation10], 128, 128, 8
    $region33: #{tpu_custom_call.1} parent=1 // pred_fallthru
      _
    // Predicated region
    $region34: #{tpu_custom_call.1} parent=1 // pred_check
      _
    $region35: #{tpu_custom_call.1} parent=1 // pred_check_branch
      %85 = sbr.rel (0) target = $region37
    $region36: #{tpu_custom_call.1} parent=1 // pred_region
      _
    $region37: #{tpu_custom_call.1} parent=1 // pred_fallthru
      _
    // Predicated region
    $region38: #{tpu_custom_call.1} parent=1 // pred_check
      _
    $region39: #{tpu_custom_call.1} parent=1 // pred_check_branch
      %87 = sbr.rel (0) target = $region41
    $region40: #{tpu_custom_call.1} parent=1 // pred_region
      %88 = dma.done [#allocation4], 2048
    $region41: #{tpu_custom_call.1} parent=1 // pred_fallthru
      _
    // Predicated region
    $region42: #{tpu_custom_call.1} parent=1 // pred_check
      _
    $region43: #{tpu_custom_call.1} parent=1 // pred_check_branch
      %90 = sbr.rel (0) target = $region45
    $region44: #{tpu_custom_call.1} parent=1 // pred_region
      %91 = dma.done [#allocation7], 1024
    $region45: #{tpu_custom_call.1} parent=1 // pred_fallthru
      _
    // Predicated region
    $region46: #{tpu_custom_call.1} parent=1 // pred_check
      _
    $region47: #{tpu_custom_call.1} parent=1 // pred_check_branch
      %93 = sbr.rel (0) target = $region49
    $region48: #{tpu_custom_call.1} parent=1 // pred_region
      %94 = dma.done [#allocation7], 2048
    $region49: #{tpu_custom_call.1} parent=1 // pred_fallthru
      _
    // Predicated region
    $region50: #{tpu_custom_call.1} parent=1 // pred_check
      _
    $region51: #{tpu_custom_call.1} parent=1 // pred_check_branch
      %96 = sbr.rel (0) target = $region53
    $region52: #{tpu_custom_call.1} parent=1 // pred_region
      %97 = dma.done [#allocation10], 2048
    $region53: #{tpu_custom_call.1} parent=1 // pred_fallthru
      _
    // Predicated region
    $region54: #{tpu_custom_call.1} parent=1 // pred_check
      _
    $region55: #{tpu_custom_call.1} parent=1 // pred_check_branch
      %99 = sbr.rel (0) target = $region57
    $region56: #{tpu_custom_call.1} parent=1 // pred_region
      %100 = dma.done [#allocation10], 2048
    $region57: #{tpu_custom_call.1} parent=1 // pred_fallthru
      _
    %p101 = scmp.eq.s32.totalorder 0, 0
    // Predicated region
    $region58: #{tpu_custom_call.1} parent=1 // pred_check
      %p102 = pneg %p101
    $region59: #{tpu_custom_call.1} parent=1 // pred_check_branch
      %104 = sbr.rel (%p102) target = $region61
    $region60: #{tpu_custom_call.1} parent=1 // pred_region
      %105 = vst [vmem:[#allocation2] sm:$0xff] 0.0
      %106 = vst [vmem:[#allocation2 + $0x8] sm:$0xff] 0.0
      %107 = vst [vmem:[#allocation2 + $0x10] sm:$0xff] 0.0
      %108 = vst [vmem:[#allocation2 + $0x18] sm:$0xff] 0.0
      %109 = vst [vmem:[#allocation2 + $0x20] sm:$0xff] 0.0
      %110 = vst [vmem:[#allocation2 + $0x28] sm:$0xff] 0.0
      %111 = vst [vmem:[#allocation2 + $0x30] sm:$0xff] 0.0
      %112 = vst [vmem:[#allocation2 + $0x38] sm:$0xff] 0.0
    $region61: #{tpu_custom_call.1} parent=1 // pred_fallthru
      _
    %s113 = smul.u32 0, 64
    %v114 = vlaneseq
    %v115 = vshrl.u32 %v114, 7
    %v116 = vadd.s32 %v115, 8
    %v117 = vadd.s32 %v115, 16
    %v118 = vadd.s32 %v115, 24
    %v119 = vadd.s32 %v115, 32
    %v120 = vadd.s32 %v115, 40
    %v121 = vadd.s32 %v115, 48
    %v122 = vadd.s32 %v115, 56
    %v123 = vstv %s113
    %v124 = vadd.s32 %v123, %v115
    %v125 = vadd.s32 %v123, %v116
    %v126 = vadd.s32 %v123, %v117
    %v127 = vadd.s32 %v123, %v118
    %v128 = vadd.s32 %v123, %v119
    %v129 = vadd.s32 %v123, %v120
    %v130 = vadd.s32 %v123, %v121
    %v131 = vadd.s32 %v123, %v122
    %v132 = vld [vmem:[%s0] sm:$0x1]
    %v133 = vlaneseq
    %v134 = vshrl.u32 %v133, 7
    %v135 = vsub.s32 0, %v134
    %v136 = vrot.slane %v132, %v135
    %vm137 = vcmp.eq.s32.totalorder %v136, %v124
    %vm138 = vcmp.eq.s32.totalorder %v136, %v125
    %vm139 = vcmp.eq.s32.totalorder %v136, %v126
    %vm140 = vcmp.eq.s32.totalorder %v136, %v127
    %vm141 = vcmp.eq.s32.totalorder %v136, %v128
    %vm142 = vcmp.eq.s32.totalorder %v136, %v129
    %vm143 = vcmp.eq.s32.totalorder %v136, %v130
    %vm144 = vcmp.eq.s32.totalorder %v136, %v131
    %v145 = vsel %vm137, 1, 0
    %v146 = vsel %vm138, 1, 0
    %v147 = vsel %vm139, 1, 0
    %v148 = vsel %vm140, 1, 0
    %v149 = vsel %vm141, 1, 0
    %v150 = vsel %vm142, 1, 0
    %v151 = vsel %vm143, 1, 0
    %v152 = vsel %vm144, 1, 0
    %v153 = vcvt.s32.f32 %v145
    %v154 = vcvt.s32.f32 %v146
    %v155 = vcvt.s32.f32 %v147
    %v156 = vcvt.s32.f32 %v148
    %v157 = vcvt.s32.f32 %v149
    %v158 = vcvt.s32.f32 %v150
    %v159 = vcvt.s32.f32 %v151
    %v160 = vcvt.s32.f32 %v152
    %v161 = vld [vmem:[#allocation2] sm:$0xff]
    %v162 = vld [vmem:[#allocation2 + $0x8] sm:$0xff]
    %v163 = vld [vmem:[#allocation2 + $0x10] sm:$0xff]
    %v164 = vld [vmem:[#allocation2 + $0x18] sm:$0xff]
    %v165 = vld [vmem:[#allocation2 + $0x20] sm:$0xff]
    %v166 = vld [vmem:[#allocation2 + $0x28] sm:$0xff]
    %v167 = vld [vmem:[#allocation2 + $0x30] sm:$0xff]
    %v168 = vld [vmem:[#allocation2 + $0x38] sm:$0xff]
    %v169 = vld [vmem:[#allocation3] sm:$0xff]
    %v170 = vld [vmem:[#allocation3 + $0x8] sm:$0xff]
    %v171 = vld [vmem:[#allocation3 + $0x10] sm:$0xff]
    %v172 = vld [vmem:[#allocation3 + $0x18] sm:$0xff]
    %v173 = vld [vmem:[#allocation3 + $0x20] sm:$0xff]
    %v174 = vld [vmem:[#allocation3 + $0x28] sm:$0xff]
    %v175 = vld [vmem:[#allocation3 + $0x30] sm:$0xff]
    %v176 = vld [vmem:[#allocation3 + $0x38] sm:$0xff]
    %v177 = vld [vmem:[#allocation3 + $0x40] sm:$0xff]
    %v178 = vld [vmem:[#allocation3 + $0x48] sm:$0xff]
    %v179 = vld [vmem:[#allocation3 + $0x50] sm:$0xff]
    %v180 = vld [vmem:[#allocation3 + $0x58] sm:$0xff]
    %v181 = vld [vmem:[#allocation3 + $0x60] sm:$0xff]
    %v182 = vld [vmem:[#allocation3 + $0x68] sm:$0xff]
    %v183 = vld [vmem:[#allocation3 + $0x70] sm:$0xff]
    %v184 = vld [vmem:[#allocation3 + $0x78] sm:$0xff]
    %185 = vmatprep.subr.mxu0 0.0
    %186 = vmatpush1.msra.mxu0 %v169
    %187 = vmatprep.subr.mxu0 0.0
    %188 = vmatpush1.msra.mxu0 %v170
    %189 = vmatprep.subr.mxu0 0.0
    %190 = vmatpush1.msra.mxu0 %v171
    %191 = vmatprep.subr.mxu0 0.0
    %192 = vmatpush1.msra.mxu0 %v172
    %193 = vmatprep.subr.mxu0 0.0
    %194 = vmatpush1.msra.mxu0 %v173
    %195 = vmatprep.subr.mxu0 0.0
    %196 = vmatpush1.msra.mxu0 %v174
    %197 = vmatprep.subr.mxu0 0.0
    %198 = vmatpush1.msra.mxu0 %v175
    %199 = vmatprep.subr.mxu0 0.0
    %200 = vmatpush1.msra.mxu0 %v176
    %201 = vmatprep.subr.mxu0 0.0
    %202 = vmatpush1.msra.mxu0 %v177
    %203 = vmatprep.subr.mxu0 0.0
    %204 = vmatpush1.msra.mxu0 %v178
    %205 = vmatprep.subr.mxu0 0.0
    %206 = vmatpush1.msra.mxu0 %v179
    %207 = vmatprep.subr.mxu0 0.0
    %208 = vmatpush1.msra.mxu0 %v180
    %209 = vmatprep.subr.mxu0 0.0
    %210 = vmatpush1.msra.mxu0 %v181
    %211 = vmatprep.subr.mxu0 0.0
    %212 = vmatpush1.msra.mxu0 %v182
    %213 = vmatprep.subr.mxu0 0.0
    %214 = vmatpush1.msra.mxu0 %v183
    %215 = vmatprep.subr.mxu0 0.0
    %216 = vmatpush1.msra.mxu0 %v184
    %217 = vmatprep.subr.mxu0 0.0
    %218 = vmatpush1.msra.mxu0 0.0
    %219 = vmatprep.subr.mxu0 0.0
    %220 = vmatpush1.msra.mxu0 0.0
    %221 = vmatprep.subr.mxu0 0.0
    %222 = vmatpush1.msra.mxu0 0.0
    %223 = vmatprep.subr.mxu0 0.0
    %224 = vmatpush1.msra.mxu0 0.0
    %225 = vmatprep.subr.mxu0 0.0
    %226 = vmatpush1.msra.mxu0 0.0
    %227 = vmatprep.subr.mxu0 0.0
    %228 = vmatpush1.msra.mxu0 0.0
    %229 = vmatprep.subr.mxu0 0.0
    %230 = vmatpush1.msra.mxu0 0.0
    %231 = vmatprep.subr.mxu0 0.0
    %232 = vmatpush1.msra.mxu0 0.0
    %233 = vmatprep.subr.mxu0 0.0
    %234 = vmatpush1.msra.mxu0 0.0
    %235 = vmatprep.subr.mxu0 0.0
    %236 = vmatpush1.msra.mxu0 0.0
    %237 = vmatprep.subr.mxu0 0.0
    %238 = vmatpush1.msra.mxu0 0.0
    %239 = vmatprep.subr.mxu0 0.0
    %240 = vmatpush1.msra.mxu0 0.0
    %241 = vmatprep.subr.mxu0 0.0
    %242 = vmatpush1.msra.mxu0 0.0
    %243 = vmatprep.subr.mxu0 0.0
    %244 = vmatpush1.msra.mxu0 0.0
    %245 = vmatprep.subr.mxu0 0.0
    %246 = vmatpush1.msra.mxu0 0.0
    %247 = vmatprep.subr.mxu0 0.0
    %248 = vmatpush1.msra.mxu0 0.0
    %249 = vmatprep.mubr.f32.mxu0 0.0
    %250 = vmatmul.mubr.f32.gmra.mrb[0].mxu0 %v153
    %v251 = vpop.f32.mrb[0].mxu0
    %v252 = vadd.f32 0.0, %v251
    %v253 = vpop.f32.mrb[0].mxu0
    %254 = vmatprep.mubr.f32.mxu0 0.0
    %255 = vmatmul.mubr.f32.gmra.mrb[0].mxu0 %v154
    %v256 = vpop.f32.mrb[0].mxu0
    %v257 = vadd.f32 0.0, %v256
    %v258 = vpop.f32.mrb[0].mxu0
    %259 = vmatprep.mubr.f32.mxu0 0.0
    %260 = vmatmul.mubr.f32.gmra.mrb[0].mxu0 %v155
    %v261 = vpop.f32.mrb[0].mxu0
    %v262 = vadd.f32 0.0, %v261
    %v263 = vpop.f32.mrb[0].mxu0
    %264 = vmatprep.mubr.f32.mxu0 0.0
    %265 = vmatmul.mubr.f32.gmra.mrb[0].mxu0 %v156
    %v266 = vpop.f32.mrb[0].mxu0
    %v267 = vadd.f32 0.0, %v266
    %v268 = vpop.f32.mrb[0].mxu0
    %269 = vmatprep.mubr.f32.mxu0 0.0
    %270 = vmatmul.mubr.f32.gmra.mrb[0].mxu0 %v157
    %v271 = vpop.f32.mrb[0].mxu0
    %v272 = vadd.f32 0.0, %v271
    %v273 = vpop.f32.mrb[0].mxu0
    %274 = vmatprep.mubr.f32.mxu0 0.0
    %275 = vmatmul.mubr.f32.gmra.mrb[0].mxu0 %v158
    %v276 = vpop.f32.mrb[0].mxu0
    %v277 = vadd.f32 0.0, %v276
    %v278 = vpop.f32.mrb[0].mxu0
    %279 = vmatprep.mubr.f32.mxu0 0.0
    %280 = vmatmul.mubr.f32.gmra.mrb[0].mxu0 %v159
    %v281 = vpop.f32.mrb[0].mxu0
    %v282 = vadd.f32 0.0, %v281
    %v283 = vpop.f32.mrb[0].mxu0
    %284 = vmatprep.mubr.f32.mxu0 0.0
    %285 = vmatmul.mubr.f32.gmra.mrb[0].mxu0 %v160
    %v286 = vpop.f32.mrb[0].mxu0
    %v287 = vadd.f32 0.0, %v286
    %v288 = vpop.f32.mrb[0].mxu0
    %289 = vdwg.mxu0
    %v290 = vadd.f32 %v161, %v252
    %v291 = vadd.f32 %v162, %v257
    %v292 = vadd.f32 %v163, %v262
    %v293 = vadd.f32 %v164, %v267
    %v294 = vadd.f32 %v165, %v272
    %v295 = vadd.f32 %v166, %v277
    %v296 = vadd.f32 %v167, %v282
    %v297 = vadd.f32 %v168, %v287
    %298 = vst [vmem:[#allocation2] sm:$0xff] %v290
    %299 = vst [vmem:[#allocation2 + $0x8] sm:$0xff] %v291
    %300 = vst [vmem:[#allocation2 + $0x10] sm:$0xff] %v292
    %301 = vst [vmem:[#allocation2 + $0x18] sm:$0xff] %v293
    %302 = vst [vmem:[#allocation2 + $0x20] sm:$0xff] %v294
    %303 = vst [vmem:[#allocation2 + $0x28] sm:$0xff] %v295
    %304 = vst [vmem:[#allocation2 + $0x30] sm:$0xff] %v296
    %305 = vst [vmem:[#allocation2 + $0x38] sm:$0xff] %v297
    // Predicated region
    $region62: #{tpu_custom_call.1} parent=1 // pred_check
      %p306 = pneg %p101
    $region63: #{tpu_custom_call.1} parent=1 // pred_check_branch
      %308 = sbr.rel (%p306) target = $region65
    $region64: #{tpu_custom_call.1} parent=1 // pred_region
      %v309 = vld [vmem:[#allocation2] sm:$0xff]
      %v310 = vld [vmem:[#allocation2 + $0x8] sm:$0xff]
      %v311 = vld [vmem:[#allocation2 + $0x10] sm:$0xff]
      %v312 = vld [vmem:[#allocation2 + $0x18] sm:$0xff]
      %v313 = vld [vmem:[#allocation2 + $0x20] sm:$0xff]
      %v314 = vld [vmem:[#allocation2 + $0x28] sm:$0xff]
      %v315 = vld [vmem:[#allocation2 + $0x30] sm:$0xff]
      %v316 = vld [vmem:[#allocation2 + $0x38] sm:$0xff]
      %v317 = vld [vmem:[#allocation8] sm:$0xff]
      %v318 = vld [vmem:[#allocation8 + $0x8] sm:$0xff]
      %v319 = vld [vmem:[#allocation8 + $0x10] sm:$0xff]
      %v320 = vld [vmem:[#allocation8 + $0x18] sm:$0xff]
      %v321 = vld [vmem:[#allocation8 + $0x20] sm:$0xff]
      %v322 = vld [vmem:[#allocation8 + $0x28] sm:$0xff]
      %v323 = vld [vmem:[#allocation8 + $0x30] sm:$0xff]
      %v324 = vld [vmem:[#allocation8 + $0x38] sm:$0xff]
      %v325 = vld [vmem:[#allocation8 + $0x40] sm:$0xff]
      %v326 = vld [vmem:[#allocation8 + $0x48] sm:$0xff]
      %v327 = vld [vmem:[#allocation8 + $0x50] sm:$0xff]
      %v328 = vld [vmem:[#allocation8 + $0x58] sm:$0xff]
      %v329 = vld [vmem:[#allocation8 + $0x60] sm:$0xff]
      %v330 = vld [vmem:[#allocation8 + $0x68] sm:$0xff]
      %v331 = vld [vmem:[#allocation8 + $0x70] sm:$0xff]
      %v332 = vld [vmem:[#allocation8 + $0x78] sm:$0xff]
      %333 = vmatprep.subr.mxu0 0.0
      %334 = vmatpush1.msra.mxu0 %v317
      %335 = vmatprep.subr.mxu0 0.0
      %336 = vmatpush1.msra.mxu0 %v318
      %337 = vmatprep.subr.mxu0 0.0
      %338 = vmatpush1.msra.mxu0 %v319
      %339 = vmatprep.subr.mxu0 0.0
      %340 = vmatpush1.msra.mxu0 %v320
      %341 = vmatprep.subr.mxu0 0.0
      %342 = vmatpush1.msra.mxu0 %v321
      %343 = vmatprep.subr.mxu0 0.0
      %344 = vmatpush1.msra.mxu0 %v322
      %345 = vmatprep.subr.mxu0 0.0
      %346 = vmatpush1.msra.mxu0 %v323
      %347 = vmatprep.subr.mxu0 0.0
      %348 = vmatpush1.msra.mxu0 %v324
      %349 = vmatprep.subr.mxu0 0.0
      %350 = vmatpush1.msra.mxu0 %v325
      %351 = vmatprep.subr.mxu0 0.0
      %352 = vmatpush1.msra.mxu0 %v326
      %353 = vmatprep.subr.mxu0 0.0
      %354 = vmatpush1.msra.mxu0 %v327
      %355 = vmatprep.subr.mxu0 0.0
      %356 = vmatpush1.msra.mxu0 %v328
      %357 = vmatprep.subr.mxu0 0.0
      %358 = vmatpush1.msra.mxu0 %v329
      %359 = vmatprep.subr.mxu0 0.0
      %360 = vmatpush1.msra.mxu0 %v330
      %361 = vmatprep.subr.mxu0 0.0
      %362 = vmatpush1.msra.mxu0 %v331
      %363 = vmatprep.subr.mxu0 0.0
      %364 = vmatpush1.msra.mxu0 %v332
      %365 = vmatprep.subr.mxu0 0.0
      %366 = vmatpush1.msra.mxu0 0.0
      %367 = vmatprep.subr.mxu0 0.0
      %368 = vmatpush1.msra.mxu0 0.0
      %369 = vmatprep.subr.mxu0 0.0
      %370 = vmatpush1.msra.mxu0 0.0
      %371 = vmatprep.subr.mxu0 0.0
      %372 = vmatpush1.msra.mxu0 0.0
      %373 = vmatprep.subr.mxu0 0.0
      %374 = vmatpush1.msra.mxu0 0.0
      %375 = vmatprep.subr.mxu0 0.0
      %376 = vmatpush1.msra.mxu0 0.0
      %377 = vmatprep.subr.mxu0 0.0
      %378 = vmatpush1.msra.mxu0 0.0
      %379 = vmatprep.subr.mxu0 0.0
      %380 = vmatpush1.msra.mxu0 0.0
      %381 = vmatprep.subr.mxu0 0.0
      %382 = vmatpush1.msra.mxu0 0.0
      %383 = vmatprep.subr.mxu0 0.0
      %384 = vmatpush1.msra.mxu0 0.0
      %385 = vmatprep.subr.mxu0 0.0
      %386 = vmatpush1.msra.mxu0 0.0
      %387 = vmatprep.subr.mxu0 0.0
      %388 = vmatpush1.msra.mxu0 0.0
      %389 = vmatprep.subr.mxu0 0.0
      %390 = vmatpush1.msra.mxu0 0.0
      %391 = vmatprep.subr.mxu0 0.0
      %392 = vmatpush1.msra.mxu0 0.0
      %393 = vmatprep.subr.mxu0 0.0
      %394 = vmatpush1.msra.mxu0 0.0
      %395 = vmatprep.subr.mxu0 0.0
      %396 = vmatpush1.msra.mxu0 0.0
      %397 = vmatprep.mubr.f32.mxu0 0.0
      %398 = vmatmul.mubr.f32.gmra.mrb[0].mxu0 %v309
      %v399 = vpop.f32.mrb[0].mxu0
      %v400 = vadd.f32 0.0, %v399
      %v401 = vpop.f32.mrb[0].mxu0
      %402 = vmatprep.mubr.f32.mxu0 0.0
      %403 = vmatmul.mubr.f32.gmra.mrb[0].mxu0 %v310
      %v404 = vpop.f32.mrb[0].mxu0
      %v405 = vadd.f32 0.0, %v404
      %v406 = vpop.f32.mrb[0].mxu0
      %407 = vmatprep.mubr.f32.mxu0 0.0
      %408 = vmatmul.mubr.f32.gmra.mrb[0].mxu0 %v311
      %v409 = vpop.f32.mrb[0].mxu0
      %v410 = vadd.f32 0.0, %v409
      %v411 = vpop.f32.mrb[0].mxu0
      %412 = vmatprep.mubr.f32.mxu0 0.0
      %413 = vmatmul.mubr.f32.gmra.mrb[0].mxu0 %v312
      %v414 = vpop.f32.mrb[0].mxu0
      %v415 = vadd.f32 0.0, %v414
      %v416 = vpop.f32.mrb[0].mxu0
      %417 = vmatprep.mubr.f32.mxu0 0.0
      %418 = vmatmul.mubr.f32.gmra.mrb[0].mxu0 %v313
      %v419 = vpop.f32.mrb[0].mxu0
      %v420 = vadd.f32 0.0, %v419
      %v421 = vpop.f32.mrb[0].mxu0
      %422 = vmatprep.mubr.f32.mxu0 0.0
      %423 = vmatmul.mubr.f32.gmra.mrb[0].mxu0 %v314
      %v424 = vpop.f32.mrb[0].mxu0
      %v425 = vadd.f32 0.0, %v424
      %v426 = vpop.f32.mrb[0].mxu0
      %427 = vmatprep.mubr.f32.mxu0 0.0
      %428 = vmatmul.mubr.f32.gmra.mrb[0].mxu0 %v315
      %v429 = vpop.f32.mrb[0].mxu0
      %v430 = vadd.f32 0.0, %v429
      %v431 = vpop.f32.mrb[0].mxu0
      %432 = vmatprep.mubr.f32.mxu0 0.0
      %433 = vmatmul.mubr.f32.gmra.mrb[0].mxu0 %v316
      %v434 = vpop.f32.mrb[0].mxu0
      %v435 = vadd.f32 0.0, %v434
      %v436 = vpop.f32.mrb[0].mxu0
      %437 = vdwg.mxu0
      %v438 = vld [vmem:[%s4] sm:$0xff]
      %v439 = vld [vmem:[%s4 + $0x8] sm:$0xff]
      %v440 = vld [vmem:[%s4 + $0x10] sm:$0xff]
      %v441 = vld [vmem:[%s4 + $0x18] sm:$0xff]
      %v442 = vld [vmem:[%s4 + $0x20] sm:$0xff]
      %v443 = vld [vmem:[%s4 + $0x28] sm:$0xff]
      %v444 = vld [vmem:[%s4 + $0x30] sm:$0xff]
      %v445 = vld [vmem:[%s4 + $0x38] sm:$0xff]
      %447 = vset.pattern.permute.xlu0 0
      %448 = vperm.xlu0 %447, %v438
      %v449 = vpop.permute.xlu0 %448
      %452 = vset.pattern.permute.xlu0 0
      %453 = vperm.xlu0 %452, %v439
      %v454 = vpop.permute.xlu0 %453
      %457 = vset.pattern.permute.xlu0 0
      %458 = vperm.xlu0 %457, %v440
      %v459 = vpop.permute.xlu0 %458
      %462 = vset.pattern.permute.xlu0 0
      %463 = vperm.xlu0 %462, %v441
      %v464 = vpop.permute.xlu0 %463
      %467 = vset.pattern.permute.xlu0 0
      %468 = vperm.xlu0 %467, %v442
      %v469 = vpop.permute.xlu0 %468
      %472 = vset.pattern.permute.xlu0 0
      %473 = vperm.xlu0 %472, %v443
      %v474 = vpop.permute.xlu0 %473
      %477 = vset.pattern.permute.xlu0 0
      %478 = vperm.xlu0 %477, %v444
      %v479 = vpop.permute.xlu0 %478
      %482 = vset.pattern.permute.xlu0 0
      %483 = vperm.xlu0 %482, %v445
      %v484 = vpop.permute.xlu0 %483
      %v486 = vmul.f32 %v400, %v449
      %v487 = vmul.f32 %v405, %v454
      %v488 = vmul.f32 %v410, %v459
      %v489 = vmul.f32 %v415, %v464
      %v490 = vmul.f32 %v420, %v469
      %v491 = vmul.f32 %v425, %v474
      %v492 = vmul.f32 %v430, %v479
      %v493 = vmul.f32 %v435, %v484
      %v494 = vld [vmem:[%s2] sm:$0xff]
      %v495 = vld [vmem:[%s2 + $0x8] sm:$0xff]
      %v496 = vld [vmem:[%s2 + $0x10] sm:$0xff]
      %v497 = vld [vmem:[%s2 + $0x18] sm:$0xff]
      %v498 = vld [vmem:[%s2 + $0x20] sm:$0xff]
      %v499 = vld [vmem:[%s2 + $0x28] sm:$0xff]
      %v500 = vld [vmem:[%s2 + $0x30] sm:$0xff]
      %v501 = vld [vmem:[%s2 + $0x38] sm:$0xff]
      %v502 = vld [vmem:[#allocation9] sm:$0xff]
      %v503 = vld [vmem:[#allocation9 + $0x8] sm:$0xff]
      %v504 = vld [vmem:[#allocation9 + $0x10] sm:$0xff]
      %v505 = vld [vmem:[#allocation9 + $0x18] sm:$0xff]
      %v506 = vld [vmem:[#allocation9 + $0x20] sm:$0xff]
      %v507 = vld [vmem:[#allocation9 + $0x28] sm:$0xff]
      %v508 = vld [vmem:[#allocation9 + $0x30] sm:$0xff]
      %v509 = vld [vmem:[#allocation9 + $0x38] sm:$0xff]
      %v510 = vld [vmem:[#allocation9 + $0x40] sm:$0xff]
      %v511 = vld [vmem:[#allocation9 + $0x48] sm:$0xff]
      %v512 = vld [vmem:[#allocation9 + $0x50] sm:$0xff]
      %v513 = vld [vmem:[#allocation9 + $0x58] sm:$0xff]
      %v514 = vld [vmem:[#allocation9 + $0x60] sm:$0xff]
      %v515 = vld [vmem:[#allocation9 + $0x68] sm:$0xff]
      %v516 = vld [vmem:[#allocation9 + $0x70] sm:$0xff]
      %v517 = vld [vmem:[#allocation9 + $0x78] sm:$0xff]
      %518 = vmatprep.subr.mxu0 0.0
      %519 = vmatpush1.msra.mxu0 %v502
      %520 = vmatprep.subr.mxu0 0.0
      %521 = vmatpush1.msra.mxu0 %v503
      %522 = vmatprep.subr.mxu0 0.0
      %523 = vmatpush1.msra.mxu0 %v504
      %524 = vmatprep.subr.mxu0 0.0
      %525 = vmatpush1.msra.mxu0 %v505
      %526 = vmatprep.subr.mxu0 0.0
      %527 = vmatpush1.msra.mxu0 %v506
      %528 = vmatprep.subr.mxu0 0.0
      %529 = vmatpush1.msra.mxu0 %v507
      %530 = vmatprep.subr.mxu0 0.0
      %531 = vmatpush1.msra.mxu0 %v508
      %532 = vmatprep.subr.mxu0 0.0
      %533 = vmatpush1.msra.mxu0 %v509
      %534 = vmatprep.subr.mxu0 0.0
      %535 = vmatpush1.msra.mxu0 %v510
      %536 = vmatprep.subr.mxu0 0.0
      %537 = vmatpush1.msra.mxu0 %v511
      %538 = vmatprep.subr.mxu0 0.0
      %539 = vmatpush1.msra.mxu0 %v512
      %540 = vmatprep.subr.mxu0 0.0
      %541 = vmatpush1.msra.mxu0 %v513
      %542 = vmatprep.subr.mxu0 0.0
      %543 = vmatpush1.msra.mxu0 %v514
      %544 = vmatprep.subr.mxu0 0.0
      %545 = vmatpush1.msra.mxu0 %v515
      %546 = vmatprep.subr.mxu0 0.0
      %547 = vmatpush1.msra.mxu0 %v516
      %548 = vmatprep.subr.mxu0 0.0
      %549 = vmatpush1.msra.mxu0 %v517
      %550 = vmatprep.subr.mxu0 0.0
      %551 = vmatpush1.msra.mxu0 0.0
      %552 = vmatprep.subr.mxu0 0.0
      %553 = vmatpush1.msra.mxu0 0.0
      %554 = vmatprep.subr.mxu0 0.0
      %555 = vmatpush1.msra.mxu0 0.0
      %556 = vmatprep.subr.mxu0 0.0
      %557 = vmatpush1.msra.mxu0 0.0
      %558 = vmatprep.subr.mxu0 0.0
      %559 = vmatpush1.msra.mxu0 0.0
      %560 = vmatprep.subr.mxu0 0.0
      %561 = vmatpush1.msra.mxu0 0.0
      %562 = vmatprep.subr.mxu0 0.0
      %563 = vmatpush1.msra.mxu0 0.0
      %564 = vmatprep.subr.mxu0 0.0
      %565 = vmatpush1.msra.mxu0 0.0
      %566 = vmatprep.subr.mxu0 0.0
      %567 = vmatpush1.msra.mxu0 0.0
      %568 = vmatprep.subr.mxu0 0.0
      %569 = vmatpush1.msra.mxu0 0.0
      %570 = vmatprep.subr.mxu0 0.0
      %571 = vmatpush1.msra.mxu0 0.0
      %572 = vmatprep.subr.mxu0 0.0
      %573 = vmatpush1.msra.mxu0 0.0
      %574 = vmatprep.subr.mxu0 0.0
      %575 = vmatpush1.msra.mxu0 0.0
      %576 = vmatprep.subr.mxu0 0.0
      %577 = vmatpush1.msra.mxu0 0.0
      %578 = vmatprep.subr.mxu0 0.0
      %579 = vmatpush1.msra.mxu0 0.0
      %580 = vmatprep.subr.mxu0 0.0
      %581 = vmatpush1.msra.mxu0 0.0
      %582 = vmatprep.mubr.f32.mxu0 0.0
      %583 = vmatmul.mubr.f32.gmra.mrb[0].mxu0 %v494
      %v584 = vpop.f32.mrb[0].mxu0
      %v585 = vadd.f32 0.0, %v584
      %v586 = vpop.f32.mrb[0].mxu0
      %587 = vmatprep.mubr.f32.mxu0 0.0
      %588 = vmatmul.mubr.f32.gmra.mrb[0].mxu0 %v495
      %v589 = vpop.f32.mrb[0].mxu0
      %v590 = vadd.f32 0.0, %v589
      %v591 = vpop.f32.mrb[0].mxu0
      %592 = vmatprep.mubr.f32.mxu0 0.0
      %593 = vmatmul.mubr.f32.gmra.mrb[0].mxu0 %v496
      %v594 = vpop.f32.mrb[0].mxu0
      %v595 = vadd.f32 0.0, %v594
      %v596 = vpop.f32.mrb[0].mxu0
      %597 = vmatprep.mubr.f32.mxu0 0.0
      %598 = vmatmul.mubr.f32.gmra.mrb[0].mxu0 %v497
      %v599 = vpop.f32.mrb[0].mxu0
      %v600 = vadd.f32 0.0, %v599
      %v601 = vpop.f32.mrb[0].mxu0
      %602 = vmatprep.mubr.f32.mxu0 0.0
      %603 = vmatmul.mubr.f32.gmra.mrb[0].mxu0 %v498
      %v604 = vpop.f32.mrb[0].mxu0
      %v605 = vadd.f32 0.0, %v604
      %v606 = vpop.f32.mrb[0].mxu0
      %607 = vmatprep.mubr.f32.mxu0 0.0
      %608 = vmatmul.mubr.f32.gmra.mrb[0].mxu0 %v499
      %v609 = vpop.f32.mrb[0].mxu0
      %v610 = vadd.f32 0.0, %v609
      %v611 = vpop.f32.mrb[0].mxu0
      %612 = vmatprep.mubr.f32.mxu0 0.0
      %613 = vmatmul.mubr.f32.gmra.mrb[0].mxu0 %v500
      %v614 = vpop.f32.mrb[0].mxu0
      %v615 = vadd.f32 0.0, %v614
      %v616 = vpop.f32.mrb[0].mxu0
      %617 = vmatprep.mubr.f32.mxu0 0.0
      %618 = vmatmul.mubr.f32.gmra.mrb[0].mxu0 %v501
      %v619 = vpop.f32.mrb[0].mxu0
      %v620 = vadd.f32 0.0, %v619
      %v621 = vpop.f32.mrb[0].mxu0
      %622 = vdwg.mxu0
      %v623 = vld [vmem:[#allocation6] sm:$0xff]
      %v624 = vld [vmem:[#allocation6 + $0x8] sm:$0xff]
      %v625 = vld [vmem:[#allocation6 + $0x10] sm:$0xff]
      %v626 = vld [vmem:[#allocation6 + $0x18] sm:$0xff]
      %v627 = vld [vmem:[#allocation6 + $0x20] sm:$0xff]
      %v628 = vld [vmem:[#allocation6 + $0x28] sm:$0xff]
      %v629 = vld [vmem:[#allocation6 + $0x30] sm:$0xff]
      %v630 = vld [vmem:[#allocation6 + $0x38] sm:$0xff]
      %v631 = vld [vmem:[#allocation11] sm:$0xff]
      %v632 = vld [vmem:[#allocation11 + $0x8] sm:$0xff]
      %v633 = vld [vmem:[#allocation11 + $0x10] sm:$0xff]
      %v634 = vld [vmem:[#allocation11 + $0x18] sm:$0xff]
      %v635 = vld [vmem:[#allocation11 + $0x20] sm:$0xff]
      %v636 = vld [vmem:[#allocation11 + $0x28] sm:$0xff]
      %v637 = vld [vmem:[#allocation11 + $0x30] sm:$0xff]
      %v638 = vld [vmem:[#allocation11 + $0x38] sm:$0xff]
      %v639 = vld [vmem:[#allocation11 + $0x40] sm:$0xff]
      %v640 = vld [vmem:[#allocation11 + $0x48] sm:$0xff]
      %v641 = vld [vmem:[#allocation11 + $0x50] sm:$0xff]
      %v642 = vld [vmem:[#allocation11 + $0x58] sm:$0xff]
      %v643 = vld [vmem:[#allocation11 + $0x60] sm:$0xff]
      %v644 = vld [vmem:[#allocation11 + $0x68] sm:$0xff]
      %v645 = vld [vmem:[#allocation11 + $0x70] sm:$0xff]
      %v646 = vld [vmem:[#allocation11 + $0x78] sm:$0xff]
      %v647 = vld [vmem:[%s8] sm:$0x1]
      %v649 = vlaneseq
      %v650 = vshrl.u32 %v649, 7
      %v651 = vsub.s32 0, %v650
      %v652 = vrot.slane %v647, %v651
      %654 = vmatprep.subr.mxu0 0.0
      %655 = vmatpush1.msra.mxu0 %v631
      %656 = vmatprep.subr.mxu0 0.0
      %657 = vmatpush1.msra.mxu0 %v632
      %658 = vmatprep.subr.mxu0 0.0
      %659 = vmatpush1.msra.mxu0 %v633
      %660 = vmatprep.subr.mxu0 0.0
      %661 = vmatpush1.msra.mxu0 %v634
      %662 = vmatprep.subr.mxu0 0.0
      %663 = vmatpush1.msra.mxu0 %v635
      %664 = vmatprep.subr.mxu0 0.0
      %665 = vmatpush1.msra.mxu0 %v636
      %666 = vmatprep.subr.mxu0 0.0
      %667 = vmatpush1.msra.mxu0 %v637
      %668 = vmatprep.subr.mxu0 0.0
      %669 = vmatpush1.msra.mxu0 %v638
      %670 = vmatprep.subr.mxu0 0.0
      %671 = vmatpush1.msra.mxu0 %v639
      %672 = vmatprep.subr.mxu0 0.0
      %673 = vmatpush1.msra.mxu0 %v640
      %674 = vmatprep.subr.mxu0 0.0
      %675 = vmatpush1.msra.mxu0 %v641
      %676 = vmatprep.subr.mxu0 0.0
      %677 = vmatpush1.msra.mxu0 %v642
      %678 = vmatprep.subr.mxu0 0.0
      %679 = vmatpush1.msra.mxu0 %v643
      %680 = vmatprep.subr.mxu0 0.0
      %681 = vmatpush1.msra.mxu0 %v644
      %682 = vmatprep.subr.mxu0 0.0
      %683 = vmatpush1.msra.mxu0 %v645
      %684 = vmatprep.subr.mxu0 0.0
      %685 = vmatpush1.msra.mxu0 %v646
      %686 = vmatprep.subr.mxu0 0.0
      %687 = vmatpush1.msra.mxu0 0.0
      %688 = vmatprep.subr.mxu0 0.0
      %689 = vmatpush1.msra.mxu0 0.0
      %690 = vmatprep.subr.mxu0 0.0
      %691 = vmatpush1.msra.mxu0 0.0
      %692 = vmatprep.subr.mxu0 0.0
      %693 = vmatpush1.msra.mxu0 0.0
      %694 = vmatprep.subr.mxu0 0.0
      %695 = vmatpush1.msra.mxu0 0.0
      %696 = vmatprep.subr.mxu0 0.0
      %697 = vmatpush1.msra.mxu0 0.0
      %698 = vmatprep.subr.mxu0 0.0
      %699 = vmatpush1.msra.mxu0 0.0
      %700 = vmatprep.subr.mxu0 0.0
      %701 = vmatpush1.msra.mxu0 0.0
      %702 = vmatprep.subr.mxu0 0.0
      %703 = vmatpush1.msra.mxu0 0.0
      %704 = vmatprep.subr.mxu0 0.0
      %705 = vmatpush1.msra.mxu0 0.0
      %706 = vmatprep.subr.mxu0 0.0
      %707 = vmatpush1.msra.mxu0 0.0
      %708 = vmatprep.subr.mxu0 0.0
      %709 = vmatpush1.msra.mxu0 0.0
      %710 = vmatprep.subr.mxu0 0.0
      %711 = vmatpush1.msra.mxu0 0.0
      %712 = vmatprep.subr.mxu0 0.0
      %713 = vmatpush1.msra.mxu0 0.0
      %714 = vmatprep.subr.mxu0 0.0
      %715 = vmatpush1.msra.mxu0 0.0
      %716 = vmatprep.subr.mxu0 0.0
      %717 = vmatpush1.msra.mxu0 0.0
      %718 = vmatprep.mubr.f32.mxu0 0.0
      %719 = vmatmul.mubr.f32.gmra.mrb[0].mxu0 %v623
      %v720 = vpop.f32.mrb[0].mxu0
      %v721 = vadd.f32 %v652, %v720
      %v722 = vpop.f32.mrb[0].mxu0
      %723 = vmatprep.mubr.f32.mxu0 0.0
      %724 = vmatmul.mubr.f32.gmra.mrb[0].mxu0 %v624
      %v725 = vpop.f32.mrb[0].mxu0
      %v726 = vadd.f32 %v652, %v725
      %v727 = vpop.f32.mrb[0].mxu0
      %728 = vmatprep.mubr.f32.mxu0 0.0
      %729 = vmatmul.mubr.f32.gmra.mrb[0].mxu0 %v625
      %v730 = vpop.f32.mrb[0].mxu0
      %v731 = vadd.f32 %v652, %v730
      %v732 = vpop.f32.mrb[0].mxu0
      %733 = vmatprep.mubr.f32.mxu0 0.0
      %734 = vmatmul.mubr.f32.gmra.mrb[0].mxu0 %v626
      %v735 = vpop.f32.mrb[0].mxu0
      %v736 = vadd.f32 %v652, %v735
      %v737 = vpop.f32.mrb[0].mxu0
      %738 = vmatprep.mubr.f32.mxu0 0.0
      %739 = vmatmul.mubr.f32.gmra.mrb[0].mxu0 %v627
      %v740 = vpop.f32.mrb[0].mxu0
      %v741 = vadd.f32 %v652, %v740
      %v742 = vpop.f32.mrb[0].mxu0
      %743 = vmatprep.mubr.f32.mxu0 0.0
      %744 = vmatmul.mubr.f32.gmra.mrb[0].mxu0 %v628
      %v745 = vpop.f32.mrb[0].mxu0
      %v746 = vadd.f32 %v652, %v745
      %v747 = vpop.f32.mrb[0].mxu0
      %748 = vmatprep.mubr.f32.mxu0 0.0
      %749 = vmatmul.mubr.f32.gmra.mrb[0].mxu0 %v629
      %v750 = vpop.f32.mrb[0].mxu0
      %v751 = vadd.f32 %v652, %v750
      %v752 = vpop.f32.mrb[0].mxu0
      %753 = vmatprep.mubr.f32.mxu0 0.0
      %754 = vmatmul.mubr.f32.gmra.mrb[0].mxu0 %v630
      %v755 = vpop.f32.mrb[0].mxu0
      %v756 = vadd.f32 %v652, %v755
      %v757 = vpop.f32.mrb[0].mxu0
      %758 = vdwg.mxu0
      %v759 = vxor.u32 %v721, 2147483648
      %v760 = vxor.u32 %v726, 2147483648
      %v761 = vxor.u32 %v731, 2147483648
      %v762 = vxor.u32 %v736, 2147483648
      %v763 = vxor.u32 %v741, 2147483648
      %v764 = vxor.u32 %v746, 2147483648
      %v765 = vxor.u32 %v751, 2147483648
      %v766 = vxor.u32 %v756, 2147483648
      %v767 = vmul.f32 %v759, 1.442695
      %v768 = vpow.pop %v767
      %v769 = vmul.f32 %v760, 1.442695
      %v770 = vpow.pop %v769
      %v771 = vmul.f32 %v761, 1.442695
      %v772 = vpow.pop %v771
      %v773 = vmul.f32 %v762, 1.442695
      %v774 = vpow.pop %v773
      %v775 = vmul.f32 %v763, 1.442695
      %v776 = vpow.pop %v775
      %v777 = vmul.f32 %v764, 1.442695
      %v778 = vpow.pop %v777
      %v779 = vmul.f32 %v765, 1.442695
      %v780 = vpow.pop %v779
      %v781 = vmul.f32 %v766, 1.442695
      %v782 = vpow.pop %v781
      %v783 = vadd.f32 %v768, 1.0
      %v784 = vadd.f32 %v770, 1.0
      %v785 = vadd.f32 %v772, 1.0
      %v786 = vadd.f32 %v774, 1.0
      %v787 = vadd.f32 %v776, 1.0
      %v788 = vadd.f32 %v778, 1.0
      %v789 = vadd.f32 %v780, 1.0
      %v790 = vadd.f32 %v782, 1.0
      %v791 = vrcp.pop %v783
      %v792 = vmul.f32 1.0, %v791
      %v793 = vrcp.pop %v784
      %v794 = vmul.f32 1.0, %v793
      %v795 = vrcp.pop %v785
      %v796 = vmul.f32 1.0, %v795
      %v797 = vrcp.pop %v786
      %v798 = vmul.f32 1.0, %v797
      %v799 = vrcp.pop %v787
      %v800 = vmul.f32 1.0, %v799
      %v801 = vrcp.pop %v788
      %v802 = vmul.f32 1.0, %v801
      %v803 = vrcp.pop %v789
      %v804 = vmul.f32 1.0, %v803
      %v805 = vrcp.pop %v790
      %v806 = vmul.f32 1.0, %v805
      %v807 = vadd.f32 %v486, %v585
      %v808 = vadd.f32 %v487, %v590
      %v809 = vadd.f32 %v488, %v595
      %v810 = vadd.f32 %v489, %v600
      %v811 = vadd.f32 %v490, %v605
      %v812 = vadd.f32 %v491, %v610
      %v813 = vadd.f32 %v492, %v615
      %v814 = vadd.f32 %v493, %v620
      %v815 = vmul.f32 %v792, %v807
      %v816 = vmul.f32 %v794, %v808
      %v817 = vmul.f32 %v796, %v809
      %v818 = vmul.f32 %v798, %v810
      %v819 = vmul.f32 %v800, %v811
      %v820 = vmul.f32 %v802, %v812
      %v821 = vmul.f32 %v804, %v813
      %v822 = vmul.f32 %v806, %v814
      %v823 = vsub.f32 1.0, %v792
      %v824 = vsub.f32 1.0, %v794
      %v825 = vsub.f32 1.0, %v796
      %v826 = vsub.f32 1.0, %v798
      %v827 = vsub.f32 1.0, %v800
      %v828 = vsub.f32 1.0, %v802
      %v829 = vsub.f32 1.0, %v804
      %v830 = vsub.f32 1.0, %v806
      %v831 = vmul.f32 %v823, %v623
      %v832 = vmul.f32 %v824, %v624
      %v833 = vmul.f32 %v825, %v625
      %v834 = vmul.f32 %v826, %v626
      %v835 = vmul.f32 %v827, %v627
      %v836 = vmul.f32 %v828, %v628
      %v837 = vmul.f32 %v829, %v629
      %v838 = vmul.f32 %v830, %v630
      %v839 = vadd.f32 %v815, %v831
      %v840 = vadd.f32 %v816, %v832
      %v841 = vadd.f32 %v817, %v833
      %v842 = vadd.f32 %v818, %v834
      %v843 = vadd.f32 %v819, %v835
      %v844 = vadd.f32 %v820, %v836
      %v845 = vadd.f32 %v821, %v837
      %v846 = vadd.f32 %v822, %v838
      %v847 = vmax.f32 %v839, 0.0
      %v848 = vmax.f32 %v840, 0.0
      %v849 = vmax.f32 %v841, 0.0
      %v850 = vmax.f32 %v842, 0.0
      %v851 = vmax.f32 %v843, 0.0
      %v852 = vmax.f32 %v844, 0.0
      %v853 = vmax.f32 %v845, 0.0
      %v854 = vmax.f32 %v846, 0.0
      %855 = vst [vmem:[#allocation12] sm:$0xff] %v847
      %856 = vst [vmem:[#allocation12 + $0x8] sm:$0xff] %v848
      %857 = vst [vmem:[#allocation12 + $0x10] sm:$0xff] %v849
      %858 = vst [vmem:[#allocation12 + $0x18] sm:$0xff] %v850
      %859 = vst [vmem:[#allocation12 + $0x20] sm:$0xff] %v851
      %860 = vst [vmem:[#allocation12 + $0x28] sm:$0xff] %v852
      %861 = vst [vmem:[#allocation12 + $0x30] sm:$0xff] %v853
      %862 = vst [vmem:[#allocation12 + $0x38] sm:$0xff] %v854
    $region65: #{tpu_custom_call.1} parent=1 // pred_fallthru
      _
    // Predicated region
    $region66: #{tpu_custom_call.1} parent=1 // pred_check
      _
    $region67: #{tpu_custom_call.1} parent=1 // pred_check_branch
      %864 = sbr.rel (0) target = $region69
    $region68: #{tpu_custom_call.1} parent=1 // pred_region
      %s866 = ssub.s32 1024, 1024
      %867 = vsyncadd [#allocation5], %s866
      %s868 = sshll.u32 [#allocation12], 4
      %s869 = int_to_ptr.vmem [resolvable:$true] %s868
      %874 = dma.vmem_to_hbm [thread:$0]  %s869, 1024, %s9, [#allocation5], 128, 128, 8
    $region69: #{tpu_custom_call.1} parent=1 // pred_fallthru
      _
    // Predicated region
    $region70: #{tpu_custom_call.1} parent=1 // pred_check
      _
    $region71: #{tpu_custom_call.1} parent=1 // pred_check_branch
      %876 = sbr.rel (0) target = $region73
    $region72: #{tpu_custom_call.1} parent=1 // pred_region
      %877 = dma.done [#allocation5], 1024
    $region73: #{tpu_custom_call.1} parent=1 // pred_fallthru
      _
    %878 = vsyncpa [#allocation4], 1
    %879 = vsyncpa [#allocation7], 1
    %880 = vsyncpa [#allocation10], 1
    %881 = vsyncpa [#allocation5], 1

</llo_original>
